<compile_context>
chip_gen: v6e
topology: v6e:2x2x1
jax: 0.10.0
libtpu: 0.0.40
codegen_flags: <defaults>
</compile_context>

<pallas_src>
import functools

import jax
import jax.numpy as jnp
from jax.experimental import pallas as pl
from jax.experimental.pallas import tpu as pltpu


# Small compat shim (older jax spells this TPUCompilerParams).
_CompilerParams = (getattr(pltpu, "CompilerParams", None)
                   or getattr(pltpu, "TPUCompilerParams", None))


def _fsl_kernel(packed_ref, out_ref, *, weight, gamma, p_true):
    """Per-image focal + symmetric Lovasz hinge.

    packed_ref: (S, P) f32 block; each row is one image's -errors sorted
    ascending (== errors descending), with the binary label in the mantissa
    LSB.  out_ref: (S, 1) per-image losses.
    """
    S, P = packed_ref.shape          # P is the lane-padded pixel count
    f32 = jnp.float32

    bits = pltpu.bitcast(packed_ref[...], jnp.int32)                    # [S,P]
    g = jnp.bitwise_and(bits, 1).astype(f32)                            # sorted labels
    neg_es = pltpu.bitcast(jnp.bitwise_and(bits, jnp.int32(-2)), f32)   # -(errors), desc-sorted
    relu_es = jnp.maximum(-neg_es, 0.0)                                 # relu(errors_sorted)

    # ---------------- focal BCE (order invariant; binary targets) ------------
    xs = 1.0 + neg_es                                    # = logit * signs
    t = jnp.exp(-jnp.abs(xs))                            # one EUP exp
    lp = jnp.log(1.0 + t)                                # one EUP log
    bce = jnp.maximum(-xs, 0.0) + lp                     # softplus(-xs) == stable BCE
    if gamma == 2.0:
        sig = jnp.where(xs >= 0.0, t, 1.0) / (1.0 + t)   # sigmoid(-xs), stable
        mod = sig * sig                                  # exp(2*logsigmoid(-xs))
    else:
        invprobs = -(jnp.maximum(xs, 0.0) + lp)          # logsigmoid(-xs)
        mod = jnp.exp(gamma * invprobs)
    focal_mean = jnp.sum(mod * bce, axis=-1, keepdims=True) * (1.0 / p_true)   # [S,1]

    # ---------------- symmetric Lovasz hinge ----------------
    lane = jax.lax.broadcasted_iota(jnp.int32, (S, P), 1)

    # Inclusive cumsum of g along lanes: Hillis-Steele scan, ceil(log2(P))
    # masked XLU rolls (binary inputs -> exact in f32).
    cs = g
    d = 1
    while d < P:
        cs = cs + jnp.where(lane >= d, pltpu.roll(cs, d, axis=1), 0.0)
        d *= 2

    pos1 = (lane + 1).astype(f32)
    gts = jnp.sum(g, axis=-1, keepdims=True)             # [S,1]

    # branch 1: lovasz_hinge(logits, labels)
    inter1 = gts - cs
    union1 = gts + pos1 - cs                             # gts + cumsum(1-g)
    # branch 2: lovasz_hinge(-logits, 1-labels) shares the sorted errors:
    #   cumsum(1-g) = pos1 - cs, sum(1-g) = p_true - gts  (binary labels).
    gts2 = float(p_true) - gts
    inter2 = gts2 - (pos1 - cs)
    union2 = gts2 + cs
    jac_sum = 2.0 - inter1 / union1 - inter2 / union2    # jac1 + jac2, fused

    # Abel summation: dot(relu_es, jac - shift_right(jac))
    #              == dot(jac, relu_es - shift_left(relu_es))
    r_next = jnp.where(lane < P - 1, pltpu.roll(relu_es, P - 1, axis=1), 0.0)
    delta_r = relu_es - r_next
    lovasz = 0.5 * jnp.sum(jac_sum * delta_r, axis=-1, keepdims=True)   # [S,1]

    out_ref[...] = weight * focal_mean + (1.0 - weight) * lovasz


def focal_symmetric_lovasz_loss(pred, target, *, weight=0.5, gamma=2.0):
    """Forward of FocalSymmetricLovaszLoss(weight=0.5, gamma=2) on [B,H,W]."""
    B = pred.shape[0]
    logits = pred.reshape(B, -1).astype(jnp.float32)
    labels = target.reshape(B, -1).astype(jnp.float32)   # must be exactly {0,1}
    P = logits.shape[1]

    # Sort key: -errors = logits*signs - 1 (ascending == errors descending).
    # Pack the binary label into the mantissa LSB so a SINGLE unstable
    # single-operand sort carries both; the <=1 ulp key perturbation is
    # stripped again in-kernel.
    signs = 2.0 * labels - 1.0
    neg_errors = logits * signs - 1.0
    bits = jax.lax.bitcast_convert_type(neg_errors, jnp.int32)
    bits = jnp.bitwise_or(jnp.bitwise_and(bits, jnp.int32(-2)),
                          labels.astype(jnp.int32))
    packed = jax.lax.bitcast_convert_type(bits, jnp.float32)
    # TODO(synk): descending sort has no Pallas TPU primitive; stays in XLA.
    packed_sorted = jax.lax.sort(packed, dimension=-1, is_stable=False)

    # 8 images per block (full sublane occupancy); pad lanes to a multiple of
    # 128 with a huge sentinel: label bit 0, relu(error)=0, focal term 0.
    S, LANE = 8, 128
    Bp = ((B + S - 1) // S) * S
    Pp = ((P + LANE - 1) // LANE) * LANE
    if Bp != B or Pp != P:
        packed_sorted = jnp.pad(packed_sorted, ((0, Bp - B), (0, Pp - P)),
                                constant_values=float(2.0 ** 30))

    kernel = functools.partial(_fsl_kernel, weight=float(weight),
                               gamma=float(gamma), p_true=P)

    extra = {}
    if _CompilerParams is not None:
        extra["compiler_params"] = _CompilerParams(
            dimension_semantics=("parallel",),
            vmem_limit_bytes=64 * 1024 * 1024)

    per_image = pl.pallas_call(
        kernel,
        out_shape=jax.ShapeDtypeStruct((Bp, 1), jnp.float32),
        grid=(Bp // S,),
        in_specs=[pl.BlockSpec((S, Pp), lambda b: (b, 0))],
        out_specs=pl.BlockSpec((S, 1), lambda b: (b, 0)),
        **extra,
    )(packed_sorted)

    return jnp.mean(per_image[:B, 0])


# ---------------- pure-JAX reference (mirrors the PyTorch module) ----------------
def _lovasz_grad_ref(gt_sorted):
    gts = gt_sorted.sum()
    intersection = gts - jnp.cumsum(gt_sorted)
    union = gts + jnp.cumsum(1.0 - gt_sorted)
    jac = 1.0 - intersection / union
    return jnp.concatenate([jac[:1], jac[1:] - jac[:-1]])


def _lovasz_hinge_flat_ref(logits, labels):
    signs = 2.0 * labels - 1.0
    errors = 1.0 - logits * signs
    perm = jnp.argsort(-errors)
    errors_sorted = errors[perm]
    gt_sorted = labels[perm]
    grad = _lovasz_grad_ref(gt_sorted)
    return jnp.dot(jnp.maximum(errors_sorted, 0.0), grad)


def _lovasz_hinge_ref(logits, labels):
    per_img = [_lovasz_hinge_flat_ref(l.reshape(-1), y.reshape(-1))
               for l, y in zip(logits, labels)]
    return jnp.mean(jnp.stack(per_img))


def _focal_loss_ref(logit, target, gamma=2.0):
    max_val = jnp.maximum(-logit, 0.0)
    loss = (logit - logit * target + max_val
            + jnp.log(jnp.exp(-max_val) + jnp.exp(-logit - max_val)))
    invprobs = jax.nn.log_sigmoid(-logit * (target * 2.0 - 1.0))
    return jnp.mean(jnp.exp(invprobs * gamma) * loss)


def _focal_symmetric_lovasz_ref(pred, target, weight=0.5, gamma=2.0):
    focal = _focal_loss_ref(pred, target, gamma)
    lovasz = (_lovasz_hinge_ref(pred, target)
              + _lovasz_hinge_ref(-pred, 1.0 - target)) / 2.0
    return focal * weight + lovasz * (1.0 - weight)


if __name__ == "__main__":
    B, H, W = 2, 16, 16
    key = jax.random.PRNGKey(0)
    k1, k2 = jax.random.split(key)
    pred = jax.random.normal(k1, (B, H, W), dtype=jnp.float32)
    target = jax.random.bernoulli(k2, 0.5, (B, H, W)).astype(jnp.float32)

    loss_fn = jax.jit(focal_symmetric_lovasz_loss)
    loss = jax.block_until_ready(loss_fn(pred, target))
    ref = jax.block_until_ready(_focal_symmetric_lovasz_ref(pred, target))

    assert jnp.isfinite(loss), "non-finite loss"
    assert abs(float(loss) - float(ref)) < 2e-4, (float(loss), float(ref))
    print("KERNEL_OK")
</pallas_src>

<mosaic_0001>
module attributes {stable_mosaic.version = 11 : i64} {
  func.func @_fsl_kernel(%arg0: i32, %arg1: memref<8x256xf32, #tpu.memory_space<vmem>>, %arg2: memref<8x1xf32, #tpu.memory_space<vmem>>) attributes {dimension_semantics = [#tpu.dimension_semantics<parallel>], iteration_bounds = array<i64: 1>, scalar_prefetch = 0 : i64, scratch_operands = 0 : i64, tpu.core_type = #tpu.core_type<tc>, window_params = [{transform_indices = @transform_0, window_bounds = array<i64: 8, 256>}, {transform_indices = @transform_1, window_bounds = array<i64: 8, 1>}]} {
    %c0 = arith.constant 0 : index
    %c0_0 = arith.constant 0 : index
    %0 = vector.load %arg1[%c0, %c0_0] : memref<8x256xf32, #tpu.memory_space<vmem>>, vector<8x256xf32>
    %1 = tpu.bitcast %0 : vector<8x256xf32> -> vector<8x256xi32>
    %c1_i32 = arith.constant 1 : i32
    %2 = vector.broadcast %c1_i32 : i32 to vector<8x256xi32>
    %3 = arith.andi %1, %2 : vector<8x256xi32>
    %4 = arith.sitofp %3 : vector<8x256xi32> to vector<8x256xf32>
    %c-2_i32 = arith.constant -2 : i32
    %5 = vector.broadcast %c-2_i32 : i32 to vector<8x256xi32>
    %6 = arith.andi %1, %5 : vector<8x256xi32>
    %7 = tpu.bitcast %6 : vector<8x256xi32> -> vector<8x256xf32>
    %cst = arith.constant 0.000000e+00 : f32
    %8 = vector.broadcast %cst : f32 to vector<8x256xf32>
    %9 = arith.subf %8, %7 : vector<8x256xf32>
    %cst_1 = arith.constant 0.000000e+00 : f32
    %10 = vector.broadcast %cst_1 : f32 to vector<8x256xf32>
    %11 = arith.maximumf %9, %10 : vector<8x256xf32>
    %cst_2 = arith.constant 1.000000e+00 : f32
    %12 = vector.broadcast %cst_2 : f32 to vector<8x256xf32>
    %13 = arith.addf %12, %7 : vector<8x256xf32>
    %14 = math.absf %13 : vector<8x256xf32>
    %cst_3 = arith.constant 0.000000e+00 : f32
    %15 = vector.broadcast %cst_3 : f32 to vector<8x256xf32>
    %16 = arith.subf %15, %14 : vector<8x256xf32>
    %17 = math.exp %16 : vector<8x256xf32>
    %cst_4 = arith.constant 1.000000e+00 : f32
    %18 = vector.broadcast %cst_4 : f32 to vector<8x256xf32>
    %19 = arith.addf %18, %17 : vector<8x256xf32>
    %20 = math.log %19 : vector<8x256xf32>
    %cst_5 = arith.constant 0.000000e+00 : f32
    %21 = vector.broadcast %cst_5 : f32 to vector<8x256xf32>
    %22 = arith.subf %21, %13 : vector<8x256xf32>
    %cst_6 = arith.constant 0.000000e+00 : f32
    %23 = vector.broadcast %cst_6 : f32 to vector<8x256xf32>
    %24 = arith.maximumf %22, %23 : vector<8x256xf32>
    %25 = arith.addf %24, %20 : vector<8x256xf32>
    %cst_7 = arith.constant 0.000000e+00 : f32
    %26 = vector.broadcast %cst_7 : f32 to vector<8x256xf32>
    %27 = arith.cmpf oge, %13, %26 : vector<8x256xf32>
    %cst_8 = arith.constant 1.000000e+00 : f32
    %28 = vector.broadcast %cst_8 : f32 to vector<8x256xf32>
    %29 = arith.select %27, %17, %28 : vector<8x256xi1>, vector<8x256xf32>
    %cst_9 = arith.constant 1.000000e+00 : f32
    %30 = vector.broadcast %cst_9 : f32 to vector<8x256xf32>
    %31 = arith.addf %30, %17 : vector<8x256xf32>
    %32 = arith.divf %29, %31 : vector<8x256xf32>
    %33 = arith.mulf %32, %32 : vector<8x256xf32>
    %34 = arith.mulf %33, %25 : vector<8x256xf32>
    %cst_10 = arith.constant dense<0.000000e+00> : vector<8xf32>
    %35 = vector.multi_reduction <add>, %34, %cst_10 [1] : vector<8x256xf32> to vector<8xf32>
    %36 = vector.shape_cast %35 : vector<8xf32> to vector<8x1xf32>
    %cst_11 = arith.constant 3.906250e-03 : f32
    %37 = vector.broadcast %cst_11 : f32 to vector<8x1xf32>
    %38 = arith.mulf %36, %37 : vector<8x1xf32>
    %39 = tpu.iota {dimensions = array<i32: 1>} : vector<8x256xi32>
    %c1_i32_12 = arith.constant 1 : i32
    %40 = vector.broadcast %c1_i32_12 : i32 to vector<8x256xi32>
    %41 = arith.cmpi sge, %39, %40 : vector<8x256xi32>
    %c1_i32_13 = arith.constant 1 : i32
    %42 = tpu.dynamic_rotate %4 by %c1_i32_13 dim 1 : vector<8x256xf32>, i32 -> vector<8x256xf32>
    %cst_14 = arith.constant 0.000000e+00 : f32
    %43 = vector.broadcast %cst_14 : f32 to vector<8x256xf32>
    %44 = arith.select %41, %42, %43 : vector<8x256xi1>, vector<8x256xf32>
    %45 = arith.addf %4, %44 : vector<8x256xf32>
    %c2_i32 = arith.constant 2 : i32
    %46 = vector.broadcast %c2_i32 : i32 to vector<8x256xi32>
    %47 = arith.cmpi sge, %39, %46 : vector<8x256xi32>
    %c2_i32_15 = arith.constant 2 : i32
    %48 = tpu.dynamic_rotate %45 by %c2_i32_15 dim 1 : vector<8x256xf32>, i32 -> vector<8x256xf32>
    %cst_16 = arith.constant 0.000000e+00 : f32
    %49 = vector.broadcast %cst_16 : f32 to vector<8x256xf32>
    %50 = arith.select %47, %48, %49 : vector<8x256xi1>, vector<8x256xf32>
    %51 = arith.addf %45, %50 : vector<8x256xf32>
    %c4_i32 = arith.constant 4 : i32
    %52 = vector.broadcast %c4_i32 : i32 to vector<8x256xi32>
    %53 = arith.cmpi sge, %39, %52 : vector<8x256xi32>
    %c4_i32_17 = arith.constant 4 : i32
    %54 = tpu.dynamic_rotate %51 by %c4_i32_17 dim 1 : vector<8x256xf32>, i32 -> vector<8x256xf32>
    %cst_18 = arith.constant 0.000000e+00 : f32
    %55 = vector.broadcast %cst_18 : f32 to vector<8x256xf32>
    %56 = arith.select %53, %54, %55 : vector<8x256xi1>, vector<8x256xf32>
    %57 = arith.addf %51, %56 : vector<8x256xf32>
    %c8_i32 = arith.constant 8 : i32
    %58 = vector.broadcast %c8_i32 : i32 to vector<8x256xi32>
    %59 = arith.cmpi sge, %39, %58 : vector<8x256xi32>
    %c8_i32_19 = arith.constant 8 : i32
    %60 = tpu.dynamic_rotate %57 by %c8_i32_19 dim 1 : vector<8x256xf32>, i32 -> vector<8x256xf32>
    %cst_20 = arith.constant 0.000000e+00 : f32
    %61 = vector.broadcast %cst_20 : f32 to vector<8x256xf32>
    %62 = arith.select %59, %60, %61 : vector<8x256xi1>, vector<8x256xf32>
    %63 = arith.addf %57, %62 : vector<8x256xf32>
    %c16_i32 = arith.constant 16 : i32
    %64 = vector.broadcast %c16_i32 : i32 to vector<8x256xi32>
    %65 = arith.cmpi sge, %39, %64 : vector<8x256xi32>
    %c16_i32_21 = arith.constant 16 : i32
    %66 = tpu.dynamic_rotate %63 by %c16_i32_21 dim 1 : vector<8x256xf32>, i32 -> vector<8x256xf32>
    %cst_22 = arith.constant 0.000000e+00 : f32
    %67 = vector.broadcast %cst_22 : f32 to vector<8x256xf32>
    %68 = arith.select %65, %66, %67 : vector<8x256xi1>, vector<8x256xf32>
    %69 = arith.addf %63, %68 : vector<8x256xf32>
    %c32_i32 = arith.constant 32 : i32
    %70 = vector.broadcast %c32_i32 : i32 to vector<8x256xi32>
    %71 = arith.cmpi sge, %39, %70 : vector<8x256xi32>
    %c32_i32_23 = arith.constant 32 : i32
    %72 = tpu.dynamic_rotate %69 by %c32_i32_23 dim 1 : vector<8x256xf32>, i32 -> vector<8x256xf32>
    %cst_24 = arith.constant 0.000000e+00 : f32
    %73 = vector.broadcast %cst_24 : f32 to vector<8x256xf32>
    %74 = arith.select %71, %72, %73 : vector<8x256xi1>, vector<8x256xf32>
    %75 = arith.addf %69, %74 : vector<8x256xf32>
    %c64_i32 = arith.constant 64 : i32
    %76 = vector.broadcast %c64_i32 : i32 to vector<8x256xi32>
    %77 = arith.cmpi sge, %39, %76 : vector<8x256xi32>
    %c64_i32_25 = arith.constant 64 : i32
    %78 = tpu.dynamic_rotate %75 by %c64_i32_25 dim 1 : vector<8x256xf32>, i32 -> vector<8x256xf32>
    %cst_26 = arith.constant 0.000000e+00 : f32
    %79 = vector.broadcast %cst_26 : f32 to vector<8x256xf32>
    %80 = arith.select %77, %78, %79 : vector<8x256xi1>, vector<8x256xf32>
    %81 = arith.addf %75, %80 : vector<8x256xf32>
    %c128_i32 = arith.constant 128 : i32
    %82 = vector.broadcast %c128_i32 : i32 to vector<8x256xi32>
    %83 = arith.cmpi sge, %39, %82 : vector<8x256xi32>
    %c128_i32_27 = arith.constant 128 : i32
    %84 = tpu.dynamic_rotate %81 by %c128_i32_27 dim 1 : vector<8x256xf32>, i32 -> vector<8x256xf32>
    %cst_28 = arith.constant 0.000000e+00 : f32
    %85 = vector.broadcast %cst_28 : f32 to vector<8x256xf32>
    %86 = arith.select %83, %84, %85 : vector<8x256xi1>, vector<8x256xf32>
    %87 = arith.addf %81, %86 : vector<8x256xf32>
    %c1_i32_29 = arith.constant 1 : i32
    %88 = vector.broadcast %c1_i32_29 : i32 to vector<8x256xi32>
    %89 = arith.addi %39, %88 : vector<8x256xi32>
    %90 = arith.sitofp %89 : vector<8x256xi32> to vector<8x256xf32>
    %cst_30 = arith.constant dense<0.000000e+00> : vector<8xf32>
    %91 = vector.multi_reduction <add>, %4, %cst_30 [1] : vector<8x256xf32> to vector<8xf32>
    %92 = vector.shape_cast %91 : vector<8xf32> to vector<8x1xf32>
    %93 = vector.broadcast %92 : vector<8x1xf32> to vector<8x256xf32>
    %94 = arith.subf %93, %87 : vector<8x256xf32>
    %95 = vector.broadcast %92 : vector<8x1xf32> to vector<8x256xf32>
    %96 = arith.addf %95, %90 : vector<8x256xf32>
    %97 = arith.subf %96, %87 : vector<8x256xf32>
    %cst_31 = arith.constant 2.560000e+02 : f32
    %98 = vector.broadcast %cst_31 : f32 to vector<8x1xf32>
    %99 = arith.subf %98, %92 : vector<8x1xf32>
    %100 = arith.subf %90, %87 : vector<8x256xf32>
    %101 = vector.broadcast %99 : vector<8x1xf32> to vector<8x256xf32>
    %102 = arith.subf %101, %100 : vector<8x256xf32>
    %103 = vector.broadcast %99 : vector<8x1xf32> to vector<8x256xf32>
    %104 = arith.addf %103, %87 : vector<8x256xf32>
    %105 = arith.divf %94, %97 : vector<8x256xf32>
    %cst_32 = arith.constant 2.000000e+00 : f32
    %106 = vector.broadcast %cst_32 : f32 to vector<8x256xf32>
    %107 = arith.subf %106, %105 : vector<8x256xf32>
    %108 = arith.divf %102, %104 : vector<8x256xf32>
    %109 = arith.subf %107, %108 : vector<8x256xf32>
    %c255_i32 = arith.constant 255 : i32
    %110 = vector.broadcast %c255_i32 : i32 to vector<8x256xi32>
    %111 = arith.cmpi slt, %39, %110 : vector<8x256xi32>
    %c255_i32_33 = arith.constant 255 : i32
    %112 = tpu.dynamic_rotate %11 by %c255_i32_33 dim 1 : vector<8x256xf32>, i32 -> vector<8x256xf32>
    %cst_34 = arith.constant 0.000000e+00 : f32
    %113 = vector.broadcast %cst_34 : f32 to vector<8x256xf32>
    %114 = arith.select %111, %112, %113 : vector<8x256xi1>, vector<8x256xf32>
    %115 = arith.subf %11, %114 : vector<8x256xf32>
    %116 = arith.mulf %109, %115 : vector<8x256xf32>
    %cst_35 = arith.constant dense<0.000000e+00> : vector<8xf32>
    %117 = vector.multi_reduction <add>, %116, %cst_35 [1] : vector<8x256xf32> to vector<8xf32>
    %118 = vector.shape_cast %117 : vector<8xf32> to vector<8x1xf32>
    %cst_36 = arith.constant 5.000000e-01 : f32
    %119 = vector.broadcast %cst_36 : f32 to vector<8x1xf32>
    %120 = arith.mulf %119, %118 : vector<8x1xf32>
    %cst_37 = arith.constant 5.000000e-01 : f32
    %121 = vector.broadcast %cst_37 : f32 to vector<8x1xf32>
    %122 = arith.mulf %121, %38 : vector<8x1xf32>
    %cst_38 = arith.constant 5.000000e-01 : f32
    %123 = vector.broadcast %cst_38 : f32 to vector<8x1xf32>
    %124 = arith.mulf %123, %120 : vector<8x1xf32>
    %125 = arith.addf %122, %124 : vector<8x1xf32>
    %c0_39 = arith.constant 0 : index
    %c0_40 = arith.constant 0 : index
    %126 = vector.load %arg2[%c0_39, %c0_40] : memref<8x1xf32, #tpu.memory_space<vmem>>, vector<8x1xf32>
    tpu.vector_store %arg2[%c0_39, %c0_40], %125 {strides = array<i32>} : memref<8x1xf32, #tpu.memory_space<vmem>>, vector<8x1xf32>,
    return
  }
  func.func @transform_0(%arg0: i32) -> (i32, i32) {
    %c0_i32 = arith.constant 0 : i32
    %c0_i32_0 = arith.constant 0 : i32
    return %arg0, %c0_i32 : i32, i32
  }
  func.func @transform_1(%arg0: i32) -> (i32, i32) {
    %c0_i32 = arith.constant 0 : i32
    %c0_i32_0 = arith.constant 0 : i32
    return %arg0, %c0_i32 : i32, i32
  }
}

</mosaic_0001>

<llo_original>
// kernel: focal_symmetric_lovasz_loss.1
$region0: #{focal_symmetric_lovasz_loss.1}
  #allocation0 [shape = 'u32[]', space=smem, size = 0x4, offset = 0x4, fixed_abs, tag = 'smem constant byte address 0x4 - core index']
  #allocation1 [shape = 'u32[144,128]{1,0:T(1,128)}', space=vmem, size = 0x12000, scoped, tag = 'internal scratch']
  %s0 = inlined_call_operand.vmem [shape: f32[8,256], index: 0, kind: input, shape index: {}]
  %s1 = inlined_call_operand.vmem [shape: f32[8,1], index: 1, kind: output, shape index: {}]
  %s2 = sld [smem:[#allocation0]]
  $region14: #{focal_symmetric_lovasz_loss.1} parent=0
    _
  %s4 = ssub.s32 1, %s2
  %s5 = scalar_select 0, %s4, %s2
  // Predicated region
  $region2: #{focal_symmetric_lovasz_loss.1} parent=0 // pred_check
    _
  $region3: #{focal_symmetric_lovasz_loss.1} parent=0 // pred_check_branch
    %7 = sbr.rel (0) target = $region5
  $region4: #{focal_symmetric_lovasz_loss.1} parent=0 // pred_region
    _
  $region5: #{focal_symmetric_lovasz_loss.1} parent=0 // pred_fallthru
    _
  %v8 = vld [vmem:[%s0] sm:$0xff]
  %v9 = vld [vmem:[%s0 + $0x8] sm:$0xff]
  %v12 = vand.u32 %v8, 1
  %v13 = vand.u32 %v9, 1
  %v14 = vcvt.s32.f32 %v12
  %v15 = vcvt.s32.f32 %v13
  %v16 = vand.u32 %v8, 4294967294
  %v17 = vand.u32 %v9, 4294967294
  %v20 = vsub.f32 0.0, %v16
  %v21 = vsub.f32 0.0, %v17
  %v22 = vmax.f32 %v20, 0.0
  %v23 = vmax.f32 %v21, 0.0
  %v24 = vadd.f32 %v16, 1.0
  %v25 = vadd.f32 %v17, 1.0
  %v26 = vand.u32 2147483647, %v24
  %v27 = vand.u32 2147483647, %v25
  %v28 = vsub.f32 0.0, %v26
  %v29 = vsub.f32 0.0, %v27
  %v30 = vmul.f32 %v28, 1.442695
  %v31 = vpow.pop %v30
  %v32 = vmul.f32 %v29, 1.442695
  %v33 = vpow.pop %v32
  %v34 = vadd.f32 %v31, 1.0
  %v35 = vadd.f32 %v33, 1.0
  %v36 = vlog2.pop %v34
  %v37 = vmul.f32 %v36, 0.6931472
  %v38 = vlog2.pop %v35
  %v39 = vmul.f32 %v38, 0.6931472
  %v40 = vsub.f32 0.0, %v24
  %v41 = vsub.f32 0.0, %v25
  %v42 = vmax.f32 %v40, 0.0
  %v43 = vmax.f32 %v41, 0.0
  %v44 = vadd.f32 %v42, %v37
  %v45 = vadd.f32 %v43, %v39
  %vm46 = vcmp.ge.f32.partialorder %v24, 0.0
  %vm47 = vcmp.ge.f32.partialorder %v25, 0.0
  %v48 = vsel %vm46, %v31, 1.0
  %v49 = vsel %vm47, %v33, 1.0
  %v50 = vrcp.pop %v34
  %v51 = vmul.f32 %v48, %v50
  %v52 = vrcp.pop %v35
  %v53 = vmul.f32 %v49, %v52
  %v54 = vmul.f32 %v51, %v51
  %v55 = vmul.f32 %v53, %v53
  %v56 = vmul.f32 %v54, %v44
  %v57 = vmul.f32 %v55, %v45
  %v58 = vadd.f32 %v56, %v57
  %59 = vadd.xlane.f32.xlu0 %v58
  %v60 = vpop.xlane.xlu0 %59
  %v61 = vmul.f32 %v60, 0.00390625
  %v62 = vlaneseq
  %v63 = vand.u32 %v62, 127
  %v64 = vadd.s32 %v63, 128
  %vm65 = vcmp.ge.s32.totalorder %v63, 1
  %vm66 = vcmp.ge.s32.totalorder %v64, 1
  %67 = vrot.lane.b32.xlu0 %v14, 1
  %v68 = vpop.permute.xlu0 %67
  %69 = vrot.lane.b32.xlu0 %v15, 1
  %v70 = vpop.permute.xlu0 %69
  %vm71 = vcmp.lt.s32.totalorder %v63, 1
  %v72 = vsel %vm71, %v68, %v70
  %v73 = vsel %vm71, %v70, %v68
  %v74 = vsel %vm65, %v73, 0.0
  %v75 = vsel %vm66, %v72, 0.0
  %v76 = vadd.f32 %v14, %v74
  %v77 = vadd.f32 %v15, %v75
  %vm78 = vcmp.ge.s32.totalorder %v63, 2
  %vm79 = vcmp.ge.s32.totalorder %v64, 2
  %80 = vrot.lane.b32.xlu0 %v76, 2
  %v81 = vpop.permute.xlu0 %80
  %82 = vrot.lane.b32.xlu0 %v77, 2
  %v83 = vpop.permute.xlu0 %82
  %vm84 = vcmp.lt.s32.totalorder %v63, 2
  %v85 = vsel %vm84, %v81, %v83
  %v86 = vsel %vm84, %v83, %v81
  %v87 = vsel %vm78, %v86, 0.0
  %v88 = vsel %vm79, %v85, 0.0
  %v89 = vadd.f32 %v76, %v87
  %v90 = vadd.f32 %v77, %v88
  %vm91 = vcmp.ge.s32.totalorder %v63, 4
  %vm92 = vcmp.ge.s32.totalorder %v64, 4
  %93 = vrot.lane.b32.xlu0 %v89, 4
  %v94 = vpop.permute.xlu0 %93
  %95 = vrot.lane.b32.xlu0 %v90, 4
  %v96 = vpop.permute.xlu0 %95
  %vm97 = vcmp.lt.s32.totalorder %v63, 4
  %v98 = vsel %vm97, %v94, %v96
  %v99 = vsel %vm97, %v96, %v94
  %v100 = vsel %vm91, %v99, 0.0
  %v101 = vsel %vm92, %v98, 0.0
  %v102 = vadd.f32 %v89, %v100
  %v103 = vadd.f32 %v90, %v101
  %vm104 = vcmp.ge.s32.totalorder %v63, 8
  %vm105 = vcmp.ge.s32.totalorder %v64, 8
  %106 = vrot.lane.b32.xlu0 %v102, 8
  %v107 = vpop.permute.xlu0 %106
  %108 = vrot.lane.b32.xlu0 %v103, 8
  %v109 = vpop.permute.xlu0 %108
  %vm110 = vcmp.lt.s32.totalorder %v63, 8
  %v111 = vsel %vm110, %v107, %v109
  %v112 = vsel %vm110, %v109, %v107
  %v113 = vsel %vm104, %v112, 0.0
  %v114 = vsel %vm105, %v111, 0.0
  %v115 = vadd.f32 %v102, %v113
  %v116 = vadd.f32 %v103, %v114
  %vm117 = vcmp.ge.s32.totalorder %v63, 16
  %vm118 = vcmp.ge.s32.totalorder %v64, 16
  %119 = vrot.lane.b32.xlu0 %v115, 16
  %v120 = vpop.permute.xlu0 %119
  %121 = vrot.lane.b32.xlu0 %v116, 16
  %v122 = vpop.permute.xlu0 %121
  %vm123 = vcmp.lt.s32.totalorder %v63, 16
  %v124 = vsel %vm123, %v120, %v122
  %v125 = vsel %vm123, %v122, %v120
  %v126 = vsel %vm117, %v125, 0.0
  %v127 = vsel %vm118, %v124, 0.0
  %v128 = vadd.f32 %v115, %v126
  %v129 = vadd.f32 %v116, %v127
  %vm130 = vcmp.ge.s32.totalorder %v63, 32
  %vm131 = vcmp.ge.s32.totalorder %v64, 32
  %132 = vrot.lane.b32.xlu0 %v128, 32
  %v133 = vpop.permute.xlu0 %132
  %134 = vrot.lane.b32.xlu0 %v129, 32
  %v135 = vpop.permute.xlu0 %134
  %vm136 = vcmp.lt.s32.totalorder %v63, 32
  %v137 = vsel %vm136, %v133, %v135
  %v138 = vsel %vm136, %v135, %v133
  %v139 = vsel %vm130, %v138, 0.0
  %v140 = vsel %vm131, %v137, 0.0
  %v141 = vadd.f32 %v128, %v139
  %v142 = vadd.f32 %v129, %v140
  %vm143 = vcmp.ge.s32.totalorder %v63, 64
  %vm144 = vcmp.ge.s32.totalorder %v64, 64
  %145 = vrot.lane.b32.xlu0 %v141, 64
  %v146 = vpop.permute.xlu0 %145
  %147 = vrot.lane.b32.xlu0 %v142, 64
  %v148 = vpop.permute.xlu0 %147
  %vm149 = vcmp.lt.s32.totalorder %v63, 64
  %v150 = vsel %vm149, %v146, %v148
  %v151 = vsel %vm149, %v148, %v146
  %v152 = vsel %vm143, %v151, 0.0
  %v153 = vsel %vm144, %v150, 0.0
  %v154 = vadd.f32 %v141, %v152
  %v155 = vadd.f32 %v142, %v153
  %vm156 = vcmp.ge.s32.totalorder %v63, 128
  %vm157 = vcmp.ge.s32.totalorder %v64, 128
  %v158 = vsel %vm156, %v155, 0.0
  %v159 = vsel %vm157, %v154, 0.0
  %v160 = vadd.f32 %v154, %v158
  %v161 = vadd.f32 %v155, %v159
  %v162 = vadd.s32 %v63, 1
  %v163 = vadd.s32 %v64, 1
  %v164 = vcvt.s32.f32 %v162
  %v165 = vcvt.s32.f32 %v163
  %v166 = vadd.f32 %v14, %v15
  %167 = vadd.xlane.f32.xlu0 %v166
  %v168 = vpop.xlane.xlu0 %167
  %v169 = vsub.f32 %v168, %v160
  %v170 = vsub.f32 %v168, %v161
  %v171 = vadd.f32 %v168, %v164
  %v172 = vadd.f32 %v168, %v165
  %v173 = vsub.f32 %v171, %v160
  %v174 = vsub.f32 %v172, %v161
  %v175 = vsub.f32 256.0, %v168
  %v176 = vsub.f32 %v164, %v160
  %v177 = vsub.f32 %v165, %v161
  %v178 = vsub.f32 %v175, %v176
  %v179 = vsub.f32 %v175, %v177
  %v180 = vadd.f32 %v175, %v160
  %v181 = vadd.f32 %v175, %v161
  %v182 = vrcp.pop %v173
  %v183 = vmul.f32 %v169, %v182
  %v184 = vrcp.pop %v174
  %v185 = vmul.f32 %v170, %v184
  %v186 = vsub.f32 2.0, %v183
  %v187 = vsub.f32 2.0, %v185
  %v188 = vrcp.pop %v180
  %v189 = vmul.f32 %v178, %v188
  %v190 = vrcp.pop %v181
  %v191 = vmul.f32 %v179, %v190
  %v192 = vsub.f32 %v186, %v189
  %v193 = vsub.f32 %v187, %v191
  %vm194 = vcmp.lt.s32.totalorder %v63, 255
  %vm195 = vcmp.lt.s32.totalorder %v64, 255
  %196 = vrot.lane.b32.xlu0 %v22, 127
  %v197 = vpop.permute.xlu0 %196
  %198 = vrot.lane.b32.xlu0 %v23, 127
  %v199 = vpop.permute.xlu0 %198
  %vm200 = vcmp.lt.s32.totalorder %v63, 127
  %v201 = vsel %vm200, %v197, %v199
  %v202 = vsel %vm200, %v199, %v197
  %v203 = vsel %vm194, %v201, 0.0
  %v204 = vsel %vm195, %v202, 0.0
  %v205 = vsub.f32 %v22, %v203
  %v206 = vsub.f32 %v23, %v204
  %v207 = vmul.f32 %v192, %v205
  %v208 = vmul.f32 %v193, %v206
  %v209 = vadd.f32 %v207, %v208
  %210 = vadd.xlane.f32.xlu0 %v209
  %v211 = vpop.xlane.xlu0 %210
  %v212 = vmul.f32 %v211, 0.5
  %v213 = vmul.f32 %v61, 0.5
  %v214 = vmul.f32 %v212, 0.5
  %v215 = vadd.f32 %v213, %v214
  %vm216 = vcmask 7168
  %217 = vst.msk [vmem:[%s1] sm:$0xff] %vm216, %v215
  // Predicated region
  $region6: #{focal_symmetric_lovasz_loss.1} parent=0 // pred_check
    _
  $region7: #{focal_symmetric_lovasz_loss.1} parent=0 // pred_check_branch
    %219 = sbr.rel (0) target = $region9
  $region8: #{focal_symmetric_lovasz_loss.1} parent=0 // pred_region
    _
  $region9: #{focal_symmetric_lovasz_loss.1} parent=0 // pred_fallthru
    _
  // Predicated region
  $region10: #{focal_symmetric_lovasz_loss.1} parent=0 // pred_check
    _
  $region11: #{focal_symmetric_lovasz_loss.1} parent=0 // pred_check_branch
    %221 = sbr.rel (0) target = $region13
  $region12: #{focal_symmetric_lovasz_loss.1} parent=0 // pred_region
    _
  $region13: #{focal_symmetric_lovasz_loss.1} parent=0 // pred_fallthru
    _

</llo_original>
